<compile_context>
chip_gen: v7x
topology: tpu7x:2x2x1
jax: 0.10.0
libtpu: 0.0.40
codegen_flags: <defaults>
</compile_context>

<pallas_src>
import numpy as np
import jax
import jax.numpy as jnp
from jax.experimental import pallas as pl
from jax.experimental.pallas import tpu as pltpu


# ----------------------------------------------------------------------------
# Shared per-step body (all LSTM layers + fc head), unrolled over layers.
# h_in/c_in and h_out/c_out may be the SAME refs (state carried in place).
# ----------------------------------------------------------------------------
def _lstm_fc_step(x2d, h_in, c_in, w_ref, h_out, c_out, *, L, H, O):
    f32 = jnp.float32

    # Layer-0 x contribution: (B, O) @ (O, 4H).
    x_contrib = jnp.dot(x2d, w_ref[0:O, :], preferred_element_type=f32)

    b_off = O + 2 * L * H            # first bias row
    fc_off = b_off + L               # first fc-weight row

    h_below = h_in[L - 1]            # (B, H): previous step's top-layer h
    for l in range(L):               # L is tiny; fully unrolled
        base = O + 2 * l * H
        h_prev = h_in[l]             # (B, H)  -- read BEFORE this layer's write
        c_prev = c_in[l]

        gates = (jnp.dot(h_below, w_ref[base:base + H, :],
                         preferred_element_type=f32)
                 + jnp.dot(h_prev, w_ref[base + H:base + 2 * H, :],
                           preferred_element_type=f32)
                 + w_ref[b_off + l:b_off + l + 1, :])          # (B, 4H)
        if l == 0:
            gates = gates + x_contrib

        # Gate columns are packed (i, f, o, g): one sigmoid over 3H lanes,
        # one tanh over the last H lanes.
        sig = jax.nn.sigmoid(gates[:, :3 * H])
        g_g = jnp.tanh(gates[:, 3 * H:])
        i_g = sig[:, :H]
        f_g = sig[:, H:2 * H]
        o_g = sig[:, 2 * H:3 * H]

        c_new = f_g * c_prev + i_g * g_g
        h_new = o_g * jnp.tanh(c_new)

        h_out[l] = h_new
        c_out[l] = c_new
        h_below = h_new

    # fc head on the last layer's h; fc weight/bias are zero-padded to 4H wide.
    y_full = (jnp.dot(h_below, w_ref[fc_off:fc_off + H, :],
                      preferred_element_type=f32)
              + w_ref[fc_off + H:fc_off + H + 1, :])            # (B, 4H)
    return y_full[:, :O]


# ----------------------------------------------------------------------------
# Kernels
# ----------------------------------------------------------------------------
def _decoder_kernel(x_ref, h_ref, c_ref, w_ref, h_out_ref, c_out_ref, y_ref):
    """Single decode step, one invocation (no grid)."""
    L, _, H = h_ref.shape
    O = x_ref.shape[-1]
    y_ref[...] = _lstm_fc_step(x_ref[...], h_ref, c_ref, w_ref,
                               h_out_ref, c_out_ref, L=L, H=H, O=O)


def _decoder_seq_kernel(x_ref, h0_ref, c0_ref, w_ref, y_ref, h_ref, c_ref):
    """T fused decode steps: grid axis 0 is time ("arbitrary").  Weights and
    h/c state blocks have constant index maps, so they stay VMEM-resident and
    h/c are written back to HBM only once after the last step."""
    L, _, H = h_ref.shape
    O = x_ref.shape[-1]
    t = pl.program_id(0)

    @pl.when(t == 0)
    def _():                                   # load the initial state once
        h_ref[...] = h0_ref[...]
        c_ref[...] = c0_ref[...]

    y_ref[0] = _lstm_fc_step(x_ref[0], h_ref, c_ref, w_ref,
                             h_ref, c_ref, L=L, H=H, O=O)


# ----------------------------------------------------------------------------
# Wrappers
# ----------------------------------------------------------------------------
def decoder_forward(x, hidden, cell, params):
    """Single decoder step.  x: (B,1,O); hidden/cell: (L,B,H).
    Returns (output (B,O), hidden, cell) like the PyTorch module."""
    L, B, H = hidden.shape
    O = x.shape[-1]
    vmem = pl.BlockSpec(memory_space=pltpu.MemorySpace.VMEM)
    h_out, c_out, y = pl.pallas_call(
        _decoder_kernel,
        out_shape=(
            jax.ShapeDtypeStruct((L, B, H), jnp.float32),
            jax.ShapeDtypeStruct((L, B, H), jnp.float32),
            jax.ShapeDtypeStruct((B, O), jnp.float32),
        ),
        in_specs=[vmem] * 4,
        out_specs=(vmem, vmem, vmem),
        # hidden -> h_out and cell -> c_out reuse the same HBM buffers.
        input_output_aliases={1: 0, 2: 1},
    )(x[:, 0, :], hidden, cell, params["w_slab"])
    return y, h_out, c_out


def decoder_forward_seq(x_seq, hidden, cell, params):
    """Fused T-step decode loop (teacher-forced inputs).  x_seq: (T,B,O).
    Equivalent to calling decoder_forward T times feeding the updated state."""
    T, B, O = x_seq.shape
    L, _, H = hidden.shape
    w_slab = params["w_slab"]
    R = w_slab.shape[0]
    y_seq, h_out, c_out = pl.pallas_call(
        _decoder_seq_kernel,
        out_shape=(
            jax.ShapeDtypeStruct((T, B, O), jnp.float32),
            jax.ShapeDtypeStruct((L, B, H), jnp.float32),
            jax.ShapeDtypeStruct((L, B, H), jnp.float32),
        ),
        grid=(T,),
        in_specs=[
            pl.BlockSpec((1, B, O), lambda t: (t, 0, 0)),    # per-step x
            pl.BlockSpec((L, B, H), lambda t: (0, 0, 0)),    # initial h (resident)
            pl.BlockSpec((L, B, H), lambda t: (0, 0, 0)),    # initial c (resident)
            pl.BlockSpec((R, 4 * H), lambda t: (0, 0)),      # weight slab (resident)
        ],
        out_specs=(
            pl.BlockSpec((1, B, O), lambda t: (t, 0, 0)),    # per-step y
            pl.BlockSpec((L, B, H), lambda t: (0, 0, 0)),    # carried h state
            pl.BlockSpec((L, B, H), lambda t: (0, 0, 0)),    # carried c state
        ),
        compiler_params=pltpu.CompilerParams(
            dimension_semantics=("arbitrary",)),
    )(x_seq, hidden, cell, w_slab)
    return y_seq, h_out, c_out


# ----------------------------------------------------------------------------
# Parameter construction / pure-JAX reference
# ----------------------------------------------------------------------------
def _reorder_gates(m, axis):
    """PyTorch gate order (i, f, g, o) -> packed (i, f, o, g) along 4H axis."""
    i, f, g, o = jnp.split(m, 4, axis=axis)
    return jnp.concatenate([i, f, o, g], axis=axis)


def make_params(key, H, O, L):
    """Deterministic init mimicking nn.LSTM/nn.Linear uniform(-1/sqrt(H), 1/sqrt(H))."""
    I = H + O
    k = 1.0 / np.sqrt(H)
    keys = jax.random.split(key, 4 * L + 2)
    W_ih, W_hh, b_ih, b_hh = [], [], [], []
    for l in range(L):
        in_l = I if l == 0 else H
        W_ih.append(jax.random.uniform(keys[4 * l + 0], (4 * H, in_l),
                                       jnp.float32, -k, k))
        W_hh.append(jax.random.uniform(keys[4 * l + 1], (4 * H, H),
                                       jnp.float32, -k, k))
        b_ih.append(jax.random.uniform(keys[4 * l + 2], (4 * H,),
                                       jnp.float32, -k, k))
        b_hh.append(jax.random.uniform(keys[4 * l + 3], (4 * H,),
                                       jnp.float32, -k, k))
    fc_w = jax.random.uniform(keys[-2], (O, H), jnp.float32, -k, k)
    fc_b = jax.random.uniform(keys[-1], (O,), jnp.float32, -k, k)
    raw = dict(W_ih=W_ih, W_hh=W_hh, b_ih=b_ih, b_hh=b_hh, fc_w=fc_w, fc_b=fc_b)

    # Single packed weight slab (one DMA), width 4H, gate columns (i, f, o, g):
    #   rows [0, O)                       : layer-0 x part of W_ih, transposed
    #   rows [O + 2lH, O + 2lH + H)       : layer-l hidden part of W_ih, transposed
    #   rows [O + 2lH + H, O + 2(l+1)H)   : layer-l W_hh, transposed
    #   row  [O + 2LH + l]                : layer-l (b_ih + b_hh)
    #   rows [O + 2LH + L, ... + H)       : fc.weight^T, zero-padded to 4H cols
    #   row  [O + 2LH + L + H]            : fc.bias,     zero-padded to 4H cols
    rows = [_reorder_gates(W_ih[0][:, :O].T, 1)]
    for l in range(L):
        ih_h = W_ih[0][:, O:] if l == 0 else W_ih[l]
        rows.append(_reorder_gates(ih_h.T, 1))
        rows.append(_reorder_gates(W_hh[l].T, 1))
    for l in range(L):
        rows.append(_reorder_gates((b_ih[l] + b_hh[l])[None, :], 1))
    rows.append(jnp.zeros((H, 4 * H), jnp.float32).at[:, :O].set(fc_w.T))
    rows.append(jnp.zeros((1, 4 * H), jnp.float32).at[0, :O].set(fc_b))
    w_slab = jnp.concatenate(rows, axis=0)          # (O + 2LH + L + H + 1, 4H)

    return dict(w_slab=w_slab), raw


def decoder_reference(x, hidden, cell, raw):
    """Pure-JAX reference with PyTorch LSTM semantics (gate order i, f, g, o)."""
    L, B, H = hidden.shape
    layer_in = jnp.concatenate([x[:, 0, :], hidden[-1]], axis=-1)
    h_new, c_new = [], []
    for l in range(L):
        W_ih, W_hh = raw["W_ih"][l], raw["W_hh"][l]
        b = raw["b_ih"][l] + raw["b_hh"][l]
        gates = layer_in @ W_ih.T + hidden[l] @ W_hh.T + b
        i_g = jax.nn.sigmoid(gates[:, 0 * H:1 * H])
        f_g = jax.nn.sigmoid(gates[:, 1 * H:2 * H])
        g_g = jnp.tanh(gates[:, 2 * H:3 * H])
        o_g = jax.nn.sigmoid(gates[:, 3 * H:4 * H])
        c = f_g * cell[l] + i_g * g_g
        h = o_g * jnp.tanh(c)
        h_new.append(h); c_new.append(c)
        layer_in = h
    y = layer_in @ raw["fc_w"].T + raw["fc_b"]
    return y, jnp.stack(h_new), jnp.stack(c_new)


# ----------------------------------------------------------------------------
if __name__ == "__main__":
    B, H, O, L, T = 2, 32, 16, 2, 8   # batch, hidden, output, layers, steps

    key = jax.random.PRNGKey(0)
    k_p, k_x, k_h, k_c, k_xs = jax.random.split(key, 5)
    params, raw = make_params(k_p, H, O, L)

    x = jax.random.normal(k_x, (B, 1, O), jnp.float32)
    hidden = jax.random.normal(k_h, (L, B, H), jnp.float32)
    cell = jax.random.normal(k_c, (L, B, H), jnp.float32)

    # --- single step (exact PyTorch module forward) --------------------------
    y, h_out, c_out = decoder_forward(x, hidden, cell, params)
    jax.block_until_ready((y, h_out, c_out))

    y_r, h_r, c_r = decoder_reference(x, hidden, cell, raw)
    assert np.allclose(np.asarray(y), np.asarray(y_r), atol=1e-5, rtol=1e-5)
    assert np.allclose(np.asarray(h_out), np.asarray(h_r), atol=1e-5, rtol=1e-5)
    assert np.allclose(np.asarray(c_out), np.asarray(c_r), atol=1e-5, rtol=1e-5)

    # --- fused T-step decode loop (weights/state VMEM-resident) --------------
    x_seq = jax.random.normal(k_xs, (T, B, O), jnp.float32)
    y_seq, h_T, c_T = decoder_forward_seq(x_seq, hidden, cell, params)
    jax.block_until_ready((y_seq, h_T, c_T))

    h_t, c_t, ys = hidden, cell, []
    for t in range(T):
        y_t, h_t, c_t = decoder_reference(x_seq[t][:, None, :], h_t, c_t, raw)
        ys.append(y_t)
    y_seq_ref = jnp.stack(ys)
    assert np.allclose(np.asarray(y_seq), np.asarray(y_seq_ref), atol=1e-4, rtol=1e-4)
    assert np.allclose(np.asarray(h_T), np.asarray(h_t), atol=1e-4, rtol=1e-4)
    assert np.allclose(np.asarray(c_T), np.asarray(c_t), atol=1e-4, rtol=1e-4)

    print("KERNEL_OK")
</pallas_src>

<mosaic_0001>
module attributes {stable_mosaic.version = 11 : i64} {
  func.func @_decoder_kernel(%arg0: memref<2x16xf32, #tpu.memory_space<vmem>>, %arg1: memref<2x2x32xf32, #tpu.memory_space<vmem>>, %arg2: memref<2x2x32xf32, #tpu.memory_space<vmem>>, %arg3: memref<179x128xf32, #tpu.memory_space<vmem>>, %arg4: memref<2x2x32xf32, #tpu.memory_space<vmem>>, %arg5: memref<2x2x32xf32, #tpu.memory_space<vmem>>, %arg6: memref<2x16xf32, #tpu.memory_space<vmem>>) attributes {dimension_semantics = [], scalar_prefetch = 0 : i64, scratch_operands = 0 : i64, tpu.core_type = #tpu.core_type<tc>} {
    %c0 = arith.constant 0 : index
    %c0_0 = arith.constant 0 : index
    %0 = vector.load %arg0[%c0, %c0_0] : memref<2x16xf32, #tpu.memory_space<vmem>>, vector<2x16xf32>
    %c0_1 = arith.constant 0 : index
    %c0_2 = arith.constant 0 : index
    %1 = vector.load %arg3[%c0_1, %c0_2] : memref<179x128xf32, #tpu.memory_space<vmem>>, vector<16x128xf32>
    %cst = arith.constant dense<0.000000e+00> : vector<2x128xf32>
    %2 = tpu.matmul %0, %1, %cst {dimension_numbers = #tpu.dot_dimension_numbers<[1], [0], [0], [1], [0, 0, 1, 1], [], []>} : vector<2x16xf32>, vector<16x128xf32>, vector<2x128xf32> -> vector<2x128xf32>
    %c1 = arith.constant 1 : index
    %c0_3 = arith.constant 0 : index
    %c0_4 = arith.constant 0 : index
    %3 = vector.load %arg1[%c1, %c0_3, %c0_4] : memref<2x2x32xf32, #tpu.memory_space<vmem>>, vector<1x2x32xf32>
    %4 = vector.shape_cast %3 : vector<1x2x32xf32> to vector<2x32xf32>
    %c0_5 = arith.constant 0 : index
    %c0_6 = arith.constant 0 : index
    %c0_7 = arith.constant 0 : index
    %5 = vector.load %arg1[%c0_5, %c0_6, %c0_7] : memref<2x2x32xf32, #tpu.memory_space<vmem>>, vector<1x2x32xf32>
    %6 = vector.shape_cast %5 : vector<1x2x32xf32> to vector<2x32xf32>
    %c0_8 = arith.constant 0 : index
    %c0_9 = arith.constant 0 : index
    %c0_10 = arith.constant 0 : index
    %7 = vector.load %arg2[%c0_8, %c0_9, %c0_10] : memref<2x2x32xf32, #tpu.memory_space<vmem>>, vector<1x2x32xf32>
    %8 = vector.shape_cast %7 : vector<1x2x32xf32> to vector<2x32xf32>
    %c16 = arith.constant 16 : index
    %c0_11 = arith.constant 0 : index
    %9 = vector.load %arg3[%c16, %c0_11] : memref<179x128xf32, #tpu.memory_space<vmem>>, vector<32x128xf32>
    %cst_12 = arith.constant dense<0.000000e+00> : vector<2x128xf32>
    %10 = tpu.matmul %4, %9, %cst_12 {dimension_numbers = #tpu.dot_dimension_numbers<[1], [0], [0], [1], [0, 0, 1, 1], [], []>} : vector<2x32xf32>, vector<32x128xf32>, vector<2x128xf32> -> vector<2x128xf32>
    %c48 = arith.constant 48 : index
    %c0_13 = arith.constant 0 : index
    %11 = vector.load %arg3[%c48, %c0_13] : memref<179x128xf32, #tpu.memory_space<vmem>>, vector<32x128xf32>
    %cst_14 = arith.constant dense<0.000000e+00> : vector<2x128xf32>
    %12 = tpu.matmul %6, %11, %cst_14 {dimension_numbers = #tpu.dot_dimension_numbers<[1], [0], [0], [1], [0, 0, 1, 1], [], []>} : vector<2x32xf32>, vector<32x128xf32>, vector<2x128xf32> -> vector<2x128xf32>
    %13 = arith.addf %10, %12 : vector<2x128xf32>
    %c144 = arith.constant 144 : index
    %c0_15 = arith.constant 0 : index
    %14 = vector.load %arg3[%c144, %c0_15] : memref<179x128xf32, #tpu.memory_space<vmem>>, vector<1x128xf32>
    %15 = vector.broadcast %14 : vector<1x128xf32> to vector<2x128xf32>
    %16 = arith.addf %13, %15 : vector<2x128xf32>
    %17 = arith.addf %16, %2 : vector<2x128xf32>
    %18 = vector.extract_strided_slice %17 {offsets = [0, 0], sizes = [2, 96], strides = [1, 1]} : vector<2x128xf32> to vector<2x96xf32>
    %19 = arith.negf %18 : vector<2x96xf32>
    %20 = math.exp %19 : vector<2x96xf32>
    %cst_16 = arith.constant 1.000000e+00 : f32
    %21 = vector.broadcast %cst_16 : f32 to vector<2x96xf32>
    %22 = arith.addf %21, %20 : vector<2x96xf32>
    %23 = arith.divf %21, %22 : vector<2x96xf32>
    %24 = vector.extract_strided_slice %17 {offsets = [0, 96], sizes = [2, 32], strides = [1, 1]} : vector<2x128xf32> to vector<2x32xf32>
    %25 = math.tanh %24 : vector<2x32xf32>
    %26 = vector.extract_strided_slice %23 {offsets = [0, 0], sizes = [2, 32], strides = [1, 1]} : vector<2x96xf32> to vector<2x32xf32>
    %27 = vector.extract_strided_slice %23 {offsets = [0, 32], sizes = [2, 32], strides = [1, 1]} : vector<2x96xf32> to vector<2x32xf32>
    %28 = vector.extract_strided_slice %23 {offsets = [0, 64], sizes = [2, 32], strides = [1, 1]} : vector<2x96xf32> to vector<2x32xf32>
    %29 = arith.mulf %27, %8 : vector<2x32xf32>
    %30 = arith.mulf %26, %25 : vector<2x32xf32>
    %31 = arith.addf %29, %30 : vector<2x32xf32>
    %32 = math.tanh %31 : vector<2x32xf32>
    %33 = arith.mulf %28, %32 : vector<2x32xf32>
    %c0_17 = arith.constant 0 : index
    %c0_18 = arith.constant 0 : index
    %c0_19 = arith.constant 0 : index
    %34 = vector.load %arg4[%c0_17, %c0_18, %c0_19] : memref<2x2x32xf32, #tpu.memory_space<vmem>>, vector<1x2x32xf32>
    %35 = vector.shape_cast %34 : vector<1x2x32xf32> to vector<2x32xf32>
    %36 = vector.shape_cast %33 : vector<2x32xf32> to vector<1x2x32xf32>
    tpu.vector_store %arg4[%c0_17, %c0_18, %c0_19], %36 {strides = array<i32>} : memref<2x2x32xf32, #tpu.memory_space<vmem>>, vector<1x2x32xf32>,
    %c0_20 = arith.constant 0 : index
    %c0_21 = arith.constant 0 : index
    %c0_22 = arith.constant 0 : index
    %37 = vector.load %arg5[%c0_20, %c0_21, %c0_22] : memref<2x2x32xf32, #tpu.memory_space<vmem>>, vector<1x2x32xf32>
    %38 = vector.shape_cast %37 : vector<1x2x32xf32> to vector<2x32xf32>
    %39 = vector.shape_cast %31 : vector<2x32xf32> to vector<1x2x32xf32>
    tpu.vector_store %arg5[%c0_20, %c0_21, %c0_22], %39 {strides = array<i32>} : memref<2x2x32xf32, #tpu.memory_space<vmem>>, vector<1x2x32xf32>,
    %c1_23 = arith.constant 1 : index
    %c0_24 = arith.constant 0 : index
    %c0_25 = arith.constant 0 : index
    %40 = vector.load %arg1[%c1_23, %c0_24, %c0_25] : memref<2x2x32xf32, #tpu.memory_space<vmem>>, vector<1x2x32xf32>
    %41 = vector.shape_cast %40 : vector<1x2x32xf32> to vector<2x32xf32>
    %c1_26 = arith.constant 1 : index
    %c0_27 = arith.constant 0 : index
    %c0_28 = arith.constant 0 : index
    %42 = vector.load %arg2[%c1_26, %c0_27, %c0_28] : memref<2x2x32xf32, #tpu.memory_space<vmem>>, vector<1x2x32xf32>
    %43 = vector.shape_cast %42 : vector<1x2x32xf32> to vector<2x32xf32>
    %c80 = arith.constant 80 : index
    %c0_29 = arith.constant 0 : index
    %44 = vector.load %arg3[%c80, %c0_29] : memref<179x128xf32, #tpu.memory_space<vmem>>, vector<32x128xf32>
    %cst_30 = arith.constant dense<0.000000e+00> : vector<2x128xf32>
    %45 = tpu.matmul %33, %44, %cst_30 {dimension_numbers = #tpu.dot_dimension_numbers<[1], [0], [0], [1], [0, 0, 1, 1], [], []>} : vector<2x32xf32>, vector<32x128xf32>, vector<2x128xf32> -> vector<2x128xf32>
    %c112 = arith.constant 112 : index
    %c0_31 = arith.constant 0 : index
    %46 = vector.load %arg3[%c112, %c0_31] : memref<179x128xf32, #tpu.memory_space<vmem>>, vector<32x128xf32>
    %cst_32 = arith.constant dense<0.000000e+00> : vector<2x128xf32>
    %47 = tpu.matmul %41, %46, %cst_32 {dimension_numbers = #tpu.dot_dimension_numbers<[1], [0], [0], [1], [0, 0, 1, 1], [], []>} : vector<2x32xf32>, vector<32x128xf32>, vector<2x128xf32> -> vector<2x128xf32>
    %48 = arith.addf %45, %47 : vector<2x128xf32>
    %c145 = arith.constant 145 : index
    %c0_33 = arith.constant 0 : index
    %49 = vector.load %arg3[%c145, %c0_33] : memref<179x128xf32, #tpu.memory_space<vmem>>, vector<1x128xf32>
    %50 = vector.broadcast %49 : vector<1x128xf32> to vector<2x128xf32>
    %51 = arith.addf %48, %50 : vector<2x128xf32>
    %52 = vector.extract_strided_slice %51 {offsets = [0, 0], sizes = [2, 96], strides = [1, 1]} : vector<2x128xf32> to vector<2x96xf32>
    %53 = arith.negf %52 : vector<2x96xf32>
    %54 = math.exp %53 : vector<2x96xf32>
    %cst_34 = arith.constant 1.000000e+00 : f32
    %55 = vector.broadcast %cst_34 : f32 to vector<2x96xf32>
    %56 = arith.addf %55, %54 : vector<2x96xf32>
    %57 = arith.divf %55, %56 : vector<2x96xf32>
    %58 = vector.extract_strided_slice %51 {offsets = [0, 96], sizes = [2, 32], strides = [1, 1]} : vector<2x128xf32> to vector<2x32xf32>
    %59 = math.tanh %58 : vector<2x32xf32>
    %60 = vector.extract_strided_slice %57 {offsets = [0, 0], sizes = [2, 32], strides = [1, 1]} : vector<2x96xf32> to vector<2x32xf32>
    %61 = vector.extract_strided_slice %57 {offsets = [0, 32], sizes = [2, 32], strides = [1, 1]} : vector<2x96xf32> to vector<2x32xf32>
    %62 = vector.extract_strided_slice %57 {offsets = [0, 64], sizes = [2, 32], strides = [1, 1]} : vector<2x96xf32> to vector<2x32xf32>
    %63 = arith.mulf %61, %43 : vector<2x32xf32>
    %64 = arith.mulf %60, %59 : vector<2x32xf32>
    %65 = arith.addf %63, %64 : vector<2x32xf32>
    %66 = math.tanh %65 : vector<2x32xf32>
    %67 = arith.mulf %62, %66 : vector<2x32xf32>
    %c1_35 = arith.constant 1 : index
    %c0_36 = arith.constant 0 : index
    %c0_37 = arith.constant 0 : index
    %68 = vector.load %arg4[%c1_35, %c0_36, %c0_37] : memref<2x2x32xf32, #tpu.memory_space<vmem>>, vector<1x2x32xf32>
    %69 = vector.shape_cast %68 : vector<1x2x32xf32> to vector<2x32xf32>
    %70 = vector.shape_cast %67 : vector<2x32xf32> to vector<1x2x32xf32>
    tpu.vector_store %arg4[%c1_35, %c0_36, %c0_37], %70 {strides = array<i32>} : memref<2x2x32xf32, #tpu.memory_space<vmem>>, vector<1x2x32xf32>,
    %c1_38 = arith.constant 1 : index
    %c0_39 = arith.constant 0 : index
    %c0_40 = arith.constant 0 : index
    %71 = vector.load %arg5[%c1_38, %c0_39, %c0_40] : memref<2x2x32xf32, #tpu.memory_space<vmem>>, vector<1x2x32xf32>
    %72 = vector.shape_cast %71 : vector<1x2x32xf32> to vector<2x32xf32>
    %73 = vector.shape_cast %65 : vector<2x32xf32> to vector<1x2x32xf32>
    tpu.vector_store %arg5[%c1_38, %c0_39, %c0_40], %73 {strides = array<i32>} : memref<2x2x32xf32, #tpu.memory_space<vmem>>, vector<1x2x32xf32>,
    %c146 = arith.constant 146 : index
    %c0_41 = arith.constant 0 : index
    %74 = vector.load %arg3[%c146, %c0_41] : memref<179x128xf32, #tpu.memory_space<vmem>>, vector<32x128xf32>
    %cst_42 = arith.constant dense<0.000000e+00> : vector<2x128xf32>
    %75 = tpu.matmul %67, %74, %cst_42 {dimension_numbers = #tpu.dot_dimension_numbers<[1], [0], [0], [1], [0, 0, 1, 1], [], []>} : vector<2x32xf32>, vector<32x128xf32>, vector<2x128xf32> -> vector<2x128xf32>
    %c178 = arith.constant 178 : index
    %c0_43 = arith.constant 0 : index
    %76 = vector.load %arg3[%c178, %c0_43] : memref<179x128xf32, #tpu.memory_space<vmem>>, vector<1x128xf32>
    %77 = vector.broadcast %76 : vector<1x128xf32> to vector<2x128xf32>
    %78 = arith.addf %75, %77 : vector<2x128xf32>
    %79 = vector.extract_strided_slice %78 {offsets = [0, 0], sizes = [2, 16], strides = [1, 1]} : vector<2x128xf32> to vector<2x16xf32>
    %c0_44 = arith.constant 0 : index
    %c0_45 = arith.constant 0 : index
    %80 = vector.load %arg6[%c0_44, %c0_45] : memref<2x16xf32, #tpu.memory_space<vmem>>, vector<2x16xf32>
    tpu.vector_store %arg6[%c0_44, %c0_45], %79 {strides = array<i32>} : memref<2x16xf32, #tpu.memory_space<vmem>>, vector<2x16xf32>,
    return
  }
}

</mosaic_0001>

<llo_original>
// kernel: tpu_custom_call.1
$region0: #{tpu_custom_call.1}
  #allocation0 [shape = 'u32[]', space=smem, size = 0x4, offset = 0x4, fixed_abs, tag = 'smem constant byte address 0x4 - core index']
  #allocation1 [shape = 'u32[144,128]{1,0:T(1,128)}', space=vmem, size = 0x12000, scoped, tag = 'internal scratch']
  %s0 = inlined_call_operand.vmem [shape: f32[2,16], index: 0, kind: input, shape index: {}]
  %s1 = inlined_call_operand.hbm [shape: f32[2,2,32], index: 1, kind: input, shape index: {}, may-alias: {1,4}]
  %s2 = inlined_call_operand.hbm [shape: f32[2,2,32], index: 2, kind: input, shape index: {}, may-alias: {2,5}]
  %s3 = inlined_call_operand.hbm [shape: f32[179,128], index: 3, kind: input, shape index: {}]
  %s4 = inlined_call_operand.hbm [shape: f32[2,2,32], index: 4, kind: output, shape index: {0}, may-alias: {1,4}]
  %s5 = inlined_call_operand.hbm [shape: f32[2,2,32], index: 5, kind: output, shape index: {1}, may-alias: {2,5}]
  %s6 = inlined_call_operand.hbm [shape: f32[2,16], index: 6, kind: output, shape index: {2}]
  %7 = xla_tuple %s4, %s5, %s6
  %s8 = sld [smem:[#allocation0]]
  $region54: #{tpu_custom_call.1} parent=0
    _
  %s10 = ssub.s32 1, %s8
  %s11 = scalar_select 0, %s10, %s8
  $region1: #{tpu_custom_call.1} parent=0
    #allocation2 [shape = 'u8[2048]{0}', space=vmem, size = 0x800, scoped, tag = 'input window, operand 1, single buffered']
    #allocation3 [shape = 's32[1]{0}', space=sflag, size = 0x4, scoped, tag = 'scoped memory for tpu_custom_call.1']
    #allocation4 [shape = 's32[1]{0}', space=sflag, size = 0x4, scoped, tag = 'scoped memory for tpu_custom_call.1']
    #allocation5 [shape = 'u8[2048]{0}', space=vmem, size = 0x800, scoped, tag = 'input window, operand 2, single buffered']
    #allocation6 [shape = 's32[1]{0}', space=sflag, size = 0x4, scoped, tag = 'scoped memory for tpu_custom_call.1']
    #allocation7 [shape = 'u8[94208]{0}', space=vmem, size = 0x17000, scoped, tag = 'input window, operand 3, single buffered']
    #allocation8 [shape = 'u8[2048]{0}', space=vmem, size = 0x800, scoped, tag = 'output window, operand 0, single buffered']
    #allocation9 [shape = 'u8[2048]{0}', space=vmem, size = 0x800, scoped, tag = 'output window, operand 1, single buffered']
    #allocation10 [shape = 's32[1]{0}', space=sflag, size = 0x4, scoped, tag = 'scoped memory for tpu_custom_call.1']
    #allocation11 [shape = 'u8[1024]{0}', space=vmem, size = 0x400, scoped, tag = 'output window, operand 2, single buffered']
    %12 = vsyncpa [#allocation3], 0
    %13 = vsyncpa [#allocation6], 0
    %14 = vsyncpa [#allocation4], 0
    %15 = vsyncpa [#allocation10], 0
    // Predicated region
    $region2: #{tpu_custom_call.1} parent=1 // pred_check
      _
    $region3: #{tpu_custom_call.1} parent=1 // pred_check_branch
      %17 = sbr.rel (0) target = $region5
    $region4: #{tpu_custom_call.1} parent=1 // pred_region
      _
    $region5: #{tpu_custom_call.1} parent=1 // pred_fallthru
      _
    // Predicated region
    $region6: #{tpu_custom_call.1} parent=1 // pred_check
      _
    $region7: #{tpu_custom_call.1} parent=1 // pred_check_branch
      %19 = sbr.rel (0) target = $region9
    $region8: #{tpu_custom_call.1} parent=1 // pred_region
      %s21 = ssub.s32 64, 64
      %22 = vsyncadd [#allocation3], %s21
      %s23 = sshll.u32 [#allocation2], 4
      %s24 = int_to_ptr.vmem [resolvable:$true] %s23
      %29 = dma.hbm_to_vmem [thread:$0]  %s1, 64, %s24, [#allocation3], 32, 32, 2
    $region9: #{tpu_custom_call.1} parent=1 // pred_fallthru
      _
    // Predicated region
    $region10: #{tpu_custom_call.1} parent=1 // pred_check
      _
    $region11: #{tpu_custom_call.1} parent=1 // pred_check_branch
      %31 = sbr.rel (0) target = $region13
    $region12: #{tpu_custom_call.1} parent=1 // pred_region
      %s33 = ssub.s32 64, 64
      %34 = vsyncadd [#allocation6], %s33
      %s35 = sshll.u32 [#allocation5], 4
      %s36 = int_to_ptr.vmem [resolvable:$true] %s35
      %41 = dma.hbm_to_vmem [thread:$0]  %s2, 64, %s36, [#allocation6], 32, 32, 2
    $region13: #{tpu_custom_call.1} parent=1 // pred_fallthru
      _
    // Predicated region
    $region14: #{tpu_custom_call.1} parent=1 // pred_check
      _
    $region15: #{tpu_custom_call.1} parent=1 // pred_check_branch
      %43 = sbr.rel (0) target = $region17
    $region16: #{tpu_custom_call.1} parent=1 // pred_region
      %s45 = ssub.s32 2944, 2944
      %46 = vsyncadd [#allocation6], %s45
      %s47 = sshll.u32 [#allocation7], 4
      %s48 = int_to_ptr.vmem [resolvable:$true] %s47
      %53 = dma.hbm_to_vmem [thread:$0]  %s3, 2944, %s48, [#allocation6], 128, 128, 8
    $region17: #{tpu_custom_call.1} parent=1 // pred_fallthru
      _
    // Predicated region
    $region18: #{tpu_custom_call.1} parent=1 // pred_check
      _
    $region19: #{tpu_custom_call.1} parent=1 // pred_check_branch
      %55 = sbr.rel (0) target = $region21
    $region20: #{tpu_custom_call.1} parent=1 // pred_region
      %56 = dma.done [#allocation3], 64
    $region21: #{tpu_custom_call.1} parent=1 // pred_fallthru
      _
    // Predicated region
    $region22: #{tpu_custom_call.1} parent=1 // pred_check
      _
    $region23: #{tpu_custom_call.1} parent=1 // pred_check_branch
      %58 = sbr.rel (0) target = $region25
    $region24: #{tpu_custom_call.1} parent=1 // pred_region
      %59 = dma.done [#allocation6], 64
    $region25: #{tpu_custom_call.1} parent=1 // pred_fallthru
      _
    // Predicated region
    $region26: #{tpu_custom_call.1} parent=1 // pred_check
      _
    $region27: #{tpu_custom_call.1} parent=1 // pred_check_branch
      %61 = sbr.rel (0) target = $region29
    $region28: #{tpu_custom_call.1} parent=1 // pred_region
      %62 = dma.done [#allocation6], 2944
    $region29: #{tpu_custom_call.1} parent=1 // pred_fallthru
      _
    %v63 = vld [vmem:[%s0] sm:$0x3]
    %v64 = vld [vmem:[#allocation7] sm:$0xff]
    %v65 = vld [vmem:[#allocation7 + $0x8] sm:$0xff]
    %vm66 = vcmask 130048
    %v68 = vsel %vm66, %v63, 0
    %70 = vmatprep.subr.mxu0 0.0
    %71 = vmatpush1.msra.mxu0 %v64
    %72 = vmatprep.subr.mxu0 0.0
    %73 = vmatpush1.msra.mxu0 %v65
    %74 = vmatprep.subr.mxu0 0.0
    %75 = vmatpush1.msra.mxu0 0.0
    %76 = vmatprep.subr.mxu0 0.0
    %77 = vmatpush1.msra.mxu0 0.0
    %78 = vmatprep.subr.mxu0 0.0
    %79 = vmatpush1.msra.mxu0 0.0
    %80 = vmatprep.subr.mxu0 0.0
    %81 = vmatpush1.msra.mxu0 0.0
    %82 = vmatprep.subr.mxu0 0.0
    %83 = vmatpush1.msra.mxu0 0.0
    %84 = vmatprep.subr.mxu0 0.0
    %85 = vmatpush1.msra.mxu0 0.0
    %86 = vmatprep.subr.mxu0 0.0
    %87 = vmatpush1.msra.mxu0 0.0
    %88 = vmatprep.subr.mxu0 0.0
    %89 = vmatpush1.msra.mxu0 0.0
    %90 = vmatprep.subr.mxu0 0.0
    %91 = vmatpush1.msra.mxu0 0.0
    %92 = vmatprep.subr.mxu0 0.0
    %93 = vmatpush1.msra.mxu0 0.0
    %94 = vmatprep.subr.mxu0 0.0
    %95 = vmatpush1.msra.mxu0 0.0
    %96 = vmatprep.subr.mxu0 0.0
    %97 = vmatpush1.msra.mxu0 0.0
    %98 = vmatprep.subr.mxu0 0.0
    %99 = vmatpush1.msra.mxu0 0.0
    %100 = vmatprep.subr.mxu0 0.0
    %101 = vmatpush1.msra.mxu0 0.0
    %102 = vmatprep.subr.mxu0 0.0
    %103 = vmatpush1.msra.mxu0 0.0
    %104 = vmatprep.subr.mxu0 0.0
    %105 = vmatpush1.msra.mxu0 0.0
    %106 = vmatprep.subr.mxu0 0.0
    %107 = vmatpush1.msra.mxu0 0.0
    %108 = vmatprep.subr.mxu0 0.0
    %109 = vmatpush1.msra.mxu0 0.0
    %110 = vmatprep.subr.mxu0 0.0
    %111 = vmatpush1.msra.mxu0 0.0
    %112 = vmatprep.subr.mxu0 0.0
    %113 = vmatpush1.msra.mxu0 0.0
    %114 = vmatprep.subr.mxu0 0.0
    %115 = vmatpush1.msra.mxu0 0.0
    %116 = vmatprep.subr.mxu0 0.0
    %117 = vmatpush1.msra.mxu0 0.0
    %118 = vmatprep.subr.mxu0 0.0
    %119 = vmatpush1.msra.mxu0 0.0
    %120 = vmatprep.subr.mxu0 0.0
    %121 = vmatpush1.msra.mxu0 0.0
    %122 = vmatprep.subr.mxu0 0.0
    %123 = vmatpush1.msra.mxu0 0.0
    %124 = vmatprep.subr.mxu0 0.0
    %125 = vmatpush1.msra.mxu0 0.0
    %126 = vmatprep.subr.mxu0 0.0
    %127 = vmatpush1.msra.mxu0 0.0
    %128 = vmatprep.subr.mxu0 0.0
    %129 = vmatpush1.msra.mxu0 0.0
    %130 = vmatprep.subr.mxu0 0.0
    %131 = vmatpush1.msra.mxu0 0.0
    %132 = vmatprep.subr.mxu0 0.0
    %133 = vmatpush1.msra.mxu0 0.0
    %134 = vmatprep.mubr.f32.mxu0 0.0
    %135 = vmatmul.mubr.f32.gmra.mrb[0].mxu0 %v68
    %v136 = vpop.f32.mrb[0].mxu0
    %v137 = vadd.f32 0.0, %v136
    %v138 = vpop.f32.mrb[0].mxu0
    %139 = vdwg.mxu0
    %s140 = scalar_lea.vmem [#allocation2], 2
    %v141 = vld [vmem:[%s140] sm:$0x3]
    %v142 = vld [vmem:[#allocation2] sm:$0x3]
    %v143 = vld [vmem:[#allocation5] sm:$0x3]
    %v144 = vld [vmem:[#allocation7 + $0x10] sm:$0xff]
    %v145 = vld [vmem:[#allocation7 + $0x18] sm:$0xff]
    %v146 = vld [vmem:[#allocation7 + $0x20] sm:$0xff]
    %v147 = vld [vmem:[#allocation7 + $0x28] sm:$0xff]
    %v148 = vld [vmem:[#allocation7 + $0x30] sm:$0xff]
    %v149 = vld [vmem:[#allocation7 + $0x38] sm:$0xff]
    %v150 = vld [vmem:[#allocation7 + $0x40] sm:$0xff]
    %v151 = vld [vmem:[#allocation7 + $0x48] sm:$0xff]
    %vm152 = vcmask 261120
    %v154 = vsel %vm152, %v142, 0
    %156 = vmatprep.subr.mxu0 0.0
    %157 = vmatpush1.msra.mxu0 %v148
    %158 = vmatprep.subr.mxu0 0.0
    %159 = vmatpush1.msra.mxu0 %v149
    %160 = vmatprep.subr.mxu0 0.0
    %161 = vmatpush1.msra.mxu0 %v150
    %162 = vmatprep.subr.mxu0 0.0
    %163 = vmatpush1.msra.mxu0 %v151
    %164 = vmatprep.subr.mxu0 0.0
    %165 = vmatpush1.msra.mxu0 0.0
    %166 = vmatprep.subr.mxu0 0.0
    %167 = vmatpush1.msra.mxu0 0.0
    %168 = vmatprep.subr.mxu0 0.0
    %169 = vmatpush1.msra.mxu0 0.0
    %170 = vmatprep.subr.mxu0 0.0
    %171 = vmatpush1.msra.mxu0 0.0
    %172 = vmatprep.subr.mxu0 0.0
    %173 = vmatpush1.msra.mxu0 0.0
    %174 = vmatprep.subr.mxu0 0.0
    %175 = vmatpush1.msra.mxu0 0.0
    %176 = vmatprep.subr.mxu0 0.0
    %177 = vmatpush1.msra.mxu0 0.0
    %178 = vmatprep.subr.mxu0 0.0
    %179 = vmatpush1.msra.mxu0 0.0
    %180 = vmatprep.subr.mxu0 0.0
    %181 = vmatpush1.msra.mxu0 0.0
    %182 = vmatprep.subr.mxu0 0.0
    %183 = vmatpush1.msra.mxu0 0.0
    %184 = vmatprep.subr.mxu0 0.0
    %185 = vmatpush1.msra.mxu0 0.0
    %186 = vmatprep.subr.mxu0 0.0
    %187 = vmatpush1.msra.mxu0 0.0
    %188 = vmatprep.subr.mxu0 0.0
    %189 = vmatpush1.msra.mxu0 0.0
    %190 = vmatprep.subr.mxu0 0.0
    %191 = vmatpush1.msra.mxu0 0.0
    %192 = vmatprep.subr.mxu0 0.0
    %193 = vmatpush1.msra.mxu0 0.0
    %194 = vmatprep.subr.mxu0 0.0
    %195 = vmatpush1.msra.mxu0 0.0
    %196 = vmatprep.subr.mxu0 0.0
    %197 = vmatpush1.msra.mxu0 0.0
    %198 = vmatprep.subr.mxu0 0.0
    %199 = vmatpush1.msra.mxu0 0.0
    %200 = vmatprep.subr.mxu0 0.0
    %201 = vmatpush1.msra.mxu0 0.0
    %202 = vmatprep.subr.mxu0 0.0
    %203 = vmatpush1.msra.mxu0 0.0
    %204 = vmatprep.subr.mxu0 0.0
    %205 = vmatpush1.msra.mxu0 0.0
    %206 = vmatprep.subr.mxu0 0.0
    %207 = vmatpush1.msra.mxu0 0.0
    %208 = vmatprep.subr.mxu0 0.0
    %209 = vmatpush1.msra.mxu0 0.0
    %210 = vmatprep.subr.mxu0 0.0
    %211 = vmatpush1.msra.mxu0 0.0
    %212 = vmatprep.subr.mxu0 0.0
    %213 = vmatpush1.msra.mxu0 0.0
    %214 = vmatprep.subr.mxu0 0.0
    %215 = vmatpush1.msra.mxu0 0.0
    %216 = vmatprep.subr.mxu0 0.0
    %217 = vmatpush1.msra.mxu0 0.0
    %218 = vmatprep.subr.mxu0 0.0
    %219 = vmatpush1.msra.mxu0 0.0
    %220 = vmatprep.mubr.f32.mxu0 0.0
    %221 = vmatmul.mubr.f32.gmra.mrb[0].mxu0 %v154
    %v222 = vpop.f32.mrb[0].mxu0
    %v223 = vadd.f32 0.0, %v222
    %v224 = vpop.f32.mrb[0].mxu0
    %225 = vdwg.mxu0
    %v227 = vsel %vm152, %v141, 0
    %229 = vmatprep.subr.mxu0 0.0
    %230 = vmatpush1.msra.mxu0 %v144
    %231 = vmatprep.subr.mxu0 0.0
    %232 = vmatpush1.msra.mxu0 %v145
    %233 = vmatprep.subr.mxu0 0.0
    %234 = vmatpush1.msra.mxu0 %v146
    %235 = vmatprep.subr.mxu0 0.0
    %236 = vmatpush1.msra.mxu0 %v147
    %237 = vmatprep.subr.mxu0 0.0
    %238 = vmatpush1.msra.mxu0 0.0
    %239 = vmatprep.subr.mxu0 0.0
    %240 = vmatpush1.msra.mxu0 0.0
    %241 = vmatprep.subr.mxu0 0.0
    %242 = vmatpush1.msra.mxu0 0.0
    %243 = vmatprep.subr.mxu0 0.0
    %244 = vmatpush1.msra.mxu0 0.0
    %245 = vmatprep.subr.mxu0 0.0
    %246 = vmatpush1.msra.mxu0 0.0
    %247 = vmatprep.subr.mxu0 0.0
    %248 = vmatpush1.msra.mxu0 0.0
    %249 = vmatprep.subr.mxu0 0.0
    %250 = vmatpush1.msra.mxu0 0.0
    %251 = vmatprep.subr.mxu0 0.0
    %252 = vmatpush1.msra.mxu0 0.0
    %253 = vmatprep.subr.mxu0 0.0
    %254 = vmatpush1.msra.mxu0 0.0
    %255 = vmatprep.subr.mxu0 0.0
    %256 = vmatpush1.msra.mxu0 0.0
    %257 = vmatprep.subr.mxu0 0.0
    %258 = vmatpush1.msra.mxu0 0.0
    %259 = vmatprep.subr.mxu0 0.0
    %260 = vmatpush1.msra.mxu0 0.0
    %261 = vmatprep.subr.mxu0 0.0
    %262 = vmatpush1.msra.mxu0 0.0
    %263 = vmatprep.subr.mxu0 0.0
    %264 = vmatpush1.msra.mxu0 0.0
    %265 = vmatprep.subr.mxu0 0.0
    %266 = vmatpush1.msra.mxu0 0.0
    %267 = vmatprep.subr.mxu0 0.0
    %268 = vmatpush1.msra.mxu0 0.0
    %269 = vmatprep.subr.mxu0 0.0
    %270 = vmatpush1.msra.mxu0 0.0
    %271 = vmatprep.subr.mxu0 0.0
    %272 = vmatpush1.msra.mxu0 0.0
    %273 = vmatprep.subr.mxu0 0.0
    %274 = vmatpush1.msra.mxu0 0.0
    %275 = vmatprep.subr.mxu0 0.0
    %276 = vmatpush1.msra.mxu0 0.0
    %277 = vmatprep.subr.mxu0 0.0
    %278 = vmatpush1.msra.mxu0 0.0
    %279 = vmatprep.subr.mxu0 0.0
    %280 = vmatpush1.msra.mxu0 0.0
    %281 = vmatprep.subr.mxu0 0.0
    %282 = vmatpush1.msra.mxu0 0.0
    %283 = vmatprep.subr.mxu0 0.0
    %284 = vmatpush1.msra.mxu0 0.0
    %285 = vmatprep.subr.mxu0 0.0
    %286 = vmatpush1.msra.mxu0 0.0
    %287 = vmatprep.subr.mxu0 0.0
    %288 = vmatpush1.msra.mxu0 0.0
    %289 = vmatprep.subr.mxu0 0.0
    %290 = vmatpush1.msra.mxu0 0.0
    %291 = vmatprep.subr.mxu0 0.0
    %292 = vmatpush1.msra.mxu0 0.0
    %293 = vmatprep.mubr.f32.mxu0 0.0
    %294 = vmatmul.mubr.f32.gmra.mrb[0].mxu0 %v227
    %v295 = vpop.f32.mrb[0].mxu0
    %v296 = vadd.f32 %v223, %v295
    %v297 = vpop.f32.mrb[0].mxu0
    %298 = vdwg.mxu0
    %v299 = vld [vmem:[#allocation7 + $0x90] sm:$0x1]
    %v300 = vlaneseq
    %v301 = vshrl.u32 %v300, 7
    %v302 = vsub.s32 0, %v301
    %v303 = vrot.slane %v299, %v302
    %v304 = vadd.f32 %v296, %v303
    %v305 = vadd.f32 %v304, %v137
    %v306 = vxor.u32 %v305, 2147483648
    %v307 = vmul.f32 %v306, 1.442695
    %v308 = vpow.pop %v307
    %v309 = vadd.f32 %v308, 1.0
    %v310 = vrcp.pop %v309
    %v311 = vmul.f32 1.0, %v310
    %v312 = vtanh.pop %v305
    %314 = vrot.lane.b32.xlu0 %v143, 32
    %v315 = vpop.permute.xlu0 %314
    %v317 = vmul.f32 %v311, %v315
    %319 = vrot.lane.b32.xlu0 %v312, 32
    %v320 = vpop.permute.xlu0 %319
    %v322 = vmul.f32 %v311, %v320
    %324 = vrot.lane.b32.xlu0 %v322, 32
    %v325 = vpop.permute.xlu0 %324
    %v327 = vadd.f32 %v317, %v325
    %v328 = vtanh.pop %v327
    %330 = vrot.lane.b32.xlu0 %v328, 32
    %v331 = vpop.permute.xlu0 %330
    %v333 = vmul.f32 %v311, %v331
    %335 = vrot.lane.b32.xlu0 %v333, 64
    %v336 = vpop.permute.xlu0 %335
    %vm338 = vcmask 254976
    %339 = vst.msk [vmem:[#allocation8] sm:$0x3] %vm338, %v336
    %341 = vrot.lane.b32.xlu0 %v327, 96
    %v342 = vpop.permute.xlu0 %341
    %344 = vst.msk [vmem:[#allocation9] sm:$0x3] %vm338, %v342
    %v345 = vld [vmem:[%s140] sm:$0x3]
    %s346 = scalar_lea.vmem [#allocation5], 2
    %v347 = vld [vmem:[%s346] sm:$0x3]
    %v348 = vld [vmem:[#allocation7 + $0x50] sm:$0xff]
    %v349 = vld [vmem:[#allocation7 + $0x58] sm:$0xff]
    %v350 = vld [vmem:[#allocation7 + $0x60] sm:$0xff]
    %v351 = vld [vmem:[#allocation7 + $0x68] sm:$0xff]
    %v352 = vld [vmem:[#allocation7 + $0x70] sm:$0xff]
    %v353 = vld [vmem:[#allocation7 + $0x78] sm:$0xff]
    %v354 = vld [vmem:[#allocation7 + $0x80] sm:$0xff]
    %v355 = vld [vmem:[#allocation7 + $0x88] sm:$0xff]
    %v357 = vsel %vm152, %v345, 0
    %359 = vmatprep.subr.mxu0 0.0
    %360 = vmatpush1.msra.mxu0 %v352
    %361 = vmatprep.subr.mxu0 0.0
    %362 = vmatpush1.msra.mxu0 %v353
    %363 = vmatprep.subr.mxu0 0.0
    %364 = vmatpush1.msra.mxu0 %v354
    %365 = vmatprep.subr.mxu0 0.0
    %366 = vmatpush1.msra.mxu0 %v355
    %367 = vmatprep.subr.mxu0 0.0
    %368 = vmatpush1.msra.mxu0 0.0
    %369 = vmatprep.subr.mxu0 0.0
    %370 = vmatpush1.msra.mxu0 0.0
    %371 = vmatprep.subr.mxu0 0.0
    %372 = vmatpush1.msra.mxu0 0.0
    %373 = vmatprep.subr.mxu0 0.0
    %374 = vmatpush1.msra.mxu0 0.0
    %375 = vmatprep.subr.mxu0 0.0
    %376 = vmatpush1.msra.mxu0 0.0
    %377 = vmatprep.subr.mxu0 0.0
    %378 = vmatpush1.msra.mxu0 0.0
    %379 = vmatprep.subr.mxu0 0.0
    %380 = vmatpush1.msra.mxu0 0.0
    %381 = vmatprep.subr.mxu0 0.0
    %382 = vmatpush1.msra.mxu0 0.0
    %383 = vmatprep.subr.mxu0 0.0
    %384 = vmatpush1.msra.mxu0 0.0
    %385 = vmatprep.subr.mxu0 0.0
    %386 = vmatpush1.msra.mxu0 0.0
    %387 = vmatprep.subr.mxu0 0.0
    %388 = vmatpush1.msra.mxu0 0.0
    %389 = vmatprep.subr.mxu0 0.0
    %390 = vmatpush1.msra.mxu0 0.0
    %391 = vmatprep.subr.mxu0 0.0
    %392 = vmatpush1.msra.mxu0 0.0
    %393 = vmatprep.subr.mxu0 0.0
    %394 = vmatpush1.msra.mxu0 0.0
    %395 = vmatprep.subr.mxu0 0.0
    %396 = vmatpush1.msra.mxu0 0.0
    %397 = vmatprep.subr.mxu0 0.0
    %398 = vmatpush1.msra.mxu0 0.0
    %399 = vmatprep.subr.mxu0 0.0
    %400 = vmatpush1.msra.mxu0 0.0
    %401 = vmatprep.subr.mxu0 0.0
    %402 = vmatpush1.msra.mxu0 0.0
    %403 = vmatprep.subr.mxu0 0.0
    %404 = vmatpush1.msra.mxu0 0.0
    %405 = vmatprep.subr.mxu0 0.0
    %406 = vmatpush1.msra.mxu0 0.0
    %407 = vmatprep.subr.mxu0 0.0
    %408 = vmatpush1.msra.mxu0 0.0
    %409 = vmatprep.subr.mxu0 0.0
    %410 = vmatpush1.msra.mxu0 0.0
    %411 = vmatprep.subr.mxu0 0.0
    %412 = vmatpush1.msra.mxu0 0.0
    %413 = vmatprep.subr.mxu0 0.0
    %414 = vmatpush1.msra.mxu0 0.0
    %415 = vmatprep.subr.mxu0 0.0
    %416 = vmatpush1.msra.mxu0 0.0
    %417 = vmatprep.subr.mxu0 0.0
    %418 = vmatpush1.msra.mxu0 0.0
    %419 = vmatprep.subr.mxu0 0.0
    %420 = vmatpush1.msra.mxu0 0.0
    %421 = vmatprep.subr.mxu0 0.0
    %422 = vmatpush1.msra.mxu0 0.0
    %423 = vmatprep.mubr.f32.mxu0 0.0
    %424 = vmatmul.mubr.f32.gmra.mrb[0].mxu0 %v357
    %v425 = vpop.f32.mrb[0].mxu0
    %v426 = vadd.f32 0.0, %v425
    %v427 = vpop.f32.mrb[0].mxu0
    %428 = vdwg.mxu0
    %v429 = vsel %vm152, %v336, 0
    %431 = vmatprep.subr.mxu0 0.0
    %432 = vmatpush1.msra.mxu0 %v348
    %433 = vmatprep.subr.mxu0 0.0
    %434 = vmatpush1.msra.mxu0 %v349
    %435 = vmatprep.subr.mxu0 0.0
    %436 = vmatpush1.msra.mxu0 %v350
    %437 = vmatprep.subr.mxu0 0.0
    %438 = vmatpush1.msra.mxu0 %v351
    %439 = vmatprep.subr.mxu0 0.0
    %440 = vmatpush1.msra.mxu0 0.0
    %441 = vmatprep.subr.mxu0 0.0
    %442 = vmatpush1.msra.mxu0 0.0
    %443 = vmatprep.subr.mxu0 0.0
    %444 = vmatpush1.msra.mxu0 0.0
    %445 = vmatprep.subr.mxu0 0.0
    %446 = vmatpush1.msra.mxu0 0.0
    %447 = vmatprep.subr.mxu0 0.0
    %448 = vmatpush1.msra.mxu0 0.0
    %449 = vmatprep.subr.mxu0 0.0
    %450 = vmatpush1.msra.mxu0 0.0
    %451 = vmatprep.subr.mxu0 0.0
    %452 = vmatpush1.msra.mxu0 0.0
    %453 = vmatprep.subr.mxu0 0.0
    %454 = vmatpush1.msra.mxu0 0.0
    %455 = vmatprep.subr.mxu0 0.0
    %456 = vmatpush1.msra.mxu0 0.0
    %457 = vmatprep.subr.mxu0 0.0
    %458 = vmatpush1.msra.mxu0 0.0
    %459 = vmatprep.subr.mxu0 0.0
    %460 = vmatpush1.msra.mxu0 0.0
    %461 = vmatprep.subr.mxu0 0.0
    %462 = vmatpush1.msra.mxu0 0.0
    %463 = vmatprep.subr.mxu0 0.0
    %464 = vmatpush1.msra.mxu0 0.0
    %465 = vmatprep.subr.mxu0 0.0
    %466 = vmatpush1.msra.mxu0 0.0
    %467 = vmatprep.subr.mxu0 0.0
    %468 = vmatpush1.msra.mxu0 0.0
    %469 = vmatprep.subr.mxu0 0.0
    %470 = vmatpush1.msra.mxu0 0.0
    %471 = vmatprep.subr.mxu0 0.0
    %472 = vmatpush1.msra.mxu0 0.0
    %473 = vmatprep.subr.mxu0 0.0
    %474 = vmatpush1.msra.mxu0 0.0
    %475 = vmatprep.subr.mxu0 0.0
    %476 = vmatpush1.msra.mxu0 0.0
    %477 = vmatprep.subr.mxu0 0.0
    %478 = vmatpush1.msra.mxu0 0.0
    %479 = vmatprep.subr.mxu0 0.0
    %480 = vmatpush1.msra.mxu0 0.0
    %481 = vmatprep.subr.mxu0 0.0
    %482 = vmatpush1.msra.mxu0 0.0
    %483 = vmatprep.subr.mxu0 0.0
    %484 = vmatpush1.msra.mxu0 0.0
    %485 = vmatprep.subr.mxu0 0.0
    %486 = vmatpush1.msra.mxu0 0.0
    %487 = vmatprep.subr.mxu0 0.0
    %488 = vmatpush1.msra.mxu0 0.0
    %489 = vmatprep.subr.mxu0 0.0
    %490 = vmatpush1.msra.mxu0 0.0
    %491 = vmatprep.subr.mxu0 0.0
    %492 = vmatpush1.msra.mxu0 0.0
    %493 = vmatprep.subr.mxu0 0.0
    %494 = vmatpush1.msra.mxu0 0.0
    %495 = vmatprep.mubr.f32.mxu0 0.0
    %496 = vmatmul.mubr.f32.gmra.mrb[0].mxu0 %v429
    %v497 = vpop.f32.mrb[0].mxu0
    %v498 = vadd.f32 %v426, %v497
    %v499 = vpop.f32.mrb[0].mxu0
    %500 = vdwg.mxu0
    %v501 = vld [vmem:[#allocation7 + $0x91] sm:$0x1]
    %v502 = vlaneseq
    %v503 = vshrl.u32 %v502, 7
    %v504 = vsub.s32 0, %v503
    %v505 = vrot.slane %v501, %v504
    %v506 = vadd.f32 %v498, %v505
    %v507 = vxor.u32 %v506, 2147483648
    %v508 = vmul.f32 %v507, 1.442695
    %v509 = vpow.pop %v508
    %v510 = vadd.f32 %v509, 1.0
    %v511 = vrcp.pop %v510
    %v512 = vmul.f32 1.0, %v511
    %v513 = vtanh.pop %v506
    %515 = vrot.lane.b32.xlu0 %v347, 32
    %v516 = vpop.permute.xlu0 %515
    %v518 = vmul.f32 %v512, %v516
    %520 = vrot.lane.b32.xlu0 %v513, 32
    %v521 = vpop.permute.xlu0 %520
    %v523 = vmul.f32 %v512, %v521
    %525 = vrot.lane.b32.xlu0 %v523, 32
    %v526 = vpop.permute.xlu0 %525
    %v528 = vadd.f32 %v518, %v526
    %v529 = vtanh.pop %v528
    %531 = vrot.lane.b32.xlu0 %v529, 32
    %v532 = vpop.permute.xlu0 %531
    %v534 = vmul.f32 %v512, %v532
    %536 = vrot.lane.b32.xlu0 %v534, 64
    %v537 = vpop.permute.xlu0 %536
    %s539 = scalar_lea.vmem [#allocation8], 2
    %540 = vst.msk [vmem:[%s539] sm:$0x3] %vm338, %v537
    %542 = vrot.lane.b32.xlu0 %v528, 96
    %v543 = vpop.permute.xlu0 %542
    %s545 = scalar_lea.vmem [#allocation9], 2
    %546 = vst.msk [vmem:[%s545] sm:$0x3] %vm338, %v543
    %v547 = vld [vmem:[#allocation7 + $0x92] sm:$0xff]
    %v548 = vld [vmem:[#allocation7 + $0x9a] sm:$0xff]
    %v549 = vld [vmem:[#allocation7 + $0xa2] sm:$0xff]
    %v550 = vld [vmem:[#allocation7 + $0xaa] sm:$0xff]
    %v551 = vld [vmem:[#allocation7 + $0xb2] sm:$0x1]
    %v552 = vlaneseq
    %v553 = vshrl.u32 %v552, 7
    %v554 = vsub.s32 0, %v553
    %v555 = vrot.slane %v551, %v554
    %v556 = vsel %vm152, %v537, 0
    %558 = vmatprep.subr.mxu0 0.0
    %559 = vmatpush1.msra.mxu0 %v547
    %560 = vmatprep.subr.mxu0 0.0
    %561 = vmatpush1.msra.mxu0 %v548
    %562 = vmatprep.subr.mxu0 0.0
    %563 = vmatpush1.msra.mxu0 %v549
    %564 = vmatprep.subr.mxu0 0.0
    %565 = vmatpush1.msra.mxu0 %v550
    %566 = vmatprep.subr.mxu0 0.0
    %567 = vmatpush1.msra.mxu0 0.0
    %568 = vmatprep.subr.mxu0 0.0
    %569 = vmatpush1.msra.mxu0 0.0
    %570 = vmatprep.subr.mxu0 0.0
    %571 = vmatpush1.msra.mxu0 0.0
    %572 = vmatprep.subr.mxu0 0.0
    %573 = vmatpush1.msra.mxu0 0.0
    %574 = vmatprep.subr.mxu0 0.0
    %575 = vmatpush1.msra.mxu0 0.0
    %576 = vmatprep.subr.mxu0 0.0
    %577 = vmatpush1.msra.mxu0 0.0
    %578 = vmatprep.subr.mxu0 0.0
    %579 = vmatpush1.msra.mxu0 0.0
    %580 = vmatprep.subr.mxu0 0.0
    %581 = vmatpush1.msra.mxu0 0.0
    %582 = vmatprep.subr.mxu0 0.0
    %583 = vmatpush1.msra.mxu0 0.0
    %584 = vmatprep.subr.mxu0 0.0
    %585 = vmatpush1.msra.mxu0 0.0
    %586 = vmatprep.subr.mxu0 0.0
    %587 = vmatpush1.msra.mxu0 0.0
    %588 = vmatprep.subr.mxu0 0.0
    %589 = vmatpush1.msra.mxu0 0.0
    %590 = vmatprep.subr.mxu0 0.0
    %591 = vmatpush1.msra.mxu0 0.0
    %592 = vmatprep.subr.mxu0 0.0
    %593 = vmatpush1.msra.mxu0 0.0
    %594 = vmatprep.subr.mxu0 0.0
    %595 = vmatpush1.msra.mxu0 0.0
    %596 = vmatprep.subr.mxu0 0.0
    %597 = vmatpush1.msra.mxu0 0.0
    %598 = vmatprep.subr.mxu0 0.0
    %599 = vmatpush1.msra.mxu0 0.0
    %600 = vmatprep.subr.mxu0 0.0
    %601 = vmatpush1.msra.mxu0 0.0
    %602 = vmatprep.subr.mxu0 0.0
    %603 = vmatpush1.msra.mxu0 0.0
    %604 = vmatprep.subr.mxu0 0.0
    %605 = vmatpush1.msra.mxu0 0.0
    %606 = vmatprep.subr.mxu0 0.0
    %607 = vmatpush1.msra.mxu0 0.0
    %608 = vmatprep.subr.mxu0 0.0
    %609 = vmatpush1.msra.mxu0 0.0
    %610 = vmatprep.subr.mxu0 0.0
    %611 = vmatpush1.msra.mxu0 0.0
    %612 = vmatprep.subr.mxu0 0.0
    %613 = vmatpush1.msra.mxu0 0.0
    %614 = vmatprep.subr.mxu0 0.0
    %615 = vmatpush1.msra.mxu0 0.0
    %616 = vmatprep.subr.mxu0 0.0
    %617 = vmatpush1.msra.mxu0 0.0
    %618 = vmatprep.subr.mxu0 0.0
    %619 = vmatpush1.msra.mxu0 0.0
    %620 = vmatprep.subr.mxu0 0.0
    %621 = vmatpush1.msra.mxu0 0.0
    %622 = vmatprep.mubr.f32.mxu0 0.0
    %623 = vmatmul.mubr.f32.gmra.mrb[0].mxu0 %v556
    %v624 = vpop.f32.mrb[0].mxu0
    %v625 = vadd.f32 %v555, %v624
    %v626 = vpop.f32.mrb[0].mxu0
    %627 = vdwg.mxu0
    %vm628 = vcmask 123904
    %629 = vst.msk [vmem:[#allocation11] sm:$0x3] %vm628, %v625
    // Predicated region
    $region30: #{tpu_custom_call.1} parent=1 // pred_check
      _
    $region31: #{tpu_custom_call.1} parent=1 // pred_check_branch
      %631 = sbr.rel (0) target = $region33
    $region32: #{tpu_custom_call.1} parent=1 // pred_region
      %s633 = ssub.s32 64, 64
      %634 = vsyncadd [#allocation4], %s633
      %s635 = sshll.u32 [#allocation8], 4
      %s636 = int_to_ptr.vmem [resolvable:$true] %s635
      %641 = dma.vmem_to_hbm [thread:$0]  %s636, 64, %s4, [#allocation4], 32, 32, 2
    $region33: #{tpu_custom_call.1} parent=1 // pred_fallthru
      _
    // Predicated region
    $region34: #{tpu_custom_call.1} parent=1 // pred_check
      _
    $region35: #{tpu_custom_call.1} parent=1 // pred_check_branch
      %643 = sbr.rel (0) target = $region37
    $region36: #{tpu_custom_call.1} parent=1 // pred_region
      %s645 = ssub.s32 64, 64
      %646 = vsyncadd [#allocation10], %s645
      %s647 = sshll.u32 [#allocation9], 4
      %s648 = int_to_ptr.vmem [resolvable:$true] %s647
      %653 = dma.vmem_to_hbm [thread:$0]  %s648, 64, %s5, [#allocation10], 32, 32, 2
    $region37: #{tpu_custom_call.1} parent=1 // pred_fallthru
      _
    // Predicated region
    $region38: #{tpu_custom_call.1} parent=1 // pred_check
      _
    $region39: #{tpu_custom_call.1} parent=1 // pred_check_branch
      %655 = sbr.rel (0) target = $region41
    $region40: #{tpu_custom_call.1} parent=1 // pred_region
      %s657 = ssub.s32 32, 32
      %658 = vsyncadd [#allocation10], %s657
      %s660 = sshll.u32 [#allocation11], 4
      %s661 = int_to_ptr.vmem [resolvable:$true] %s660
      %663 = dma.vmem_to_hbm [thread:$0]  %s661, 32, %s6, [#allocation10]
    $region41: #{tpu_custom_call.1} parent=1 // pred_fallthru
      _
    // Predicated region
    $region42: #{tpu_custom_call.1} parent=1 // pred_check
      _
    $region43: #{tpu_custom_call.1} parent=1 // pred_check_branch
      %665 = sbr.rel (0) target = $region45
    $region44: #{tpu_custom_call.1} parent=1 // pred_region
      %666 = dma.done [#allocation4], 64
    $region45: #{tpu_custom_call.1} parent=1 // pred_fallthru
      _
    // Predicated region
    $region46: #{tpu_custom_call.1} parent=1 // pred_check
      _
    $region47: #{tpu_custom_call.1} parent=1 // pred_check_branch
      %668 = sbr.rel (0) target = $region49
    $region48: #{tpu_custom_call.1} parent=1 // pred_region
      %669 = dma.done [#allocation10], 64
    $region49: #{tpu_custom_call.1} parent=1 // pred_fallthru
      _
    // Predicated region
    $region50: #{tpu_custom_call.1} parent=1 // pred_check
      _
    $region51: #{tpu_custom_call.1} parent=1 // pred_check_branch
      %671 = sbr.rel (0) target = $region53
    $region52: #{tpu_custom_call.1} parent=1 // pred_region
      %672 = dma.done [#allocation10], 32
    $region53: #{tpu_custom_call.1} parent=1 // pred_fallthru
      _
    %673 = vsyncpa [#allocation3], 1
    %674 = vsyncpa [#allocation6], 1
    %675 = vsyncpa [#allocation4], 1
    %676 = vsyncpa [#allocation10], 1

</llo_original>
